<compile_context>
chip_gen: v6e
topology: v6e:2x2x1
jax: 0.10.0
libtpu: 0.0.40
codegen_flags: <defaults>
</compile_context>

<pallas_src>
import jax
import jax.numpy as jnp
from jax.experimental import pallas as pl
from jax.experimental.pallas import tpu as pltpu


# --------------------------------------------------------------------------
# Kernel bodies
# --------------------------------------------------------------------------
def _side_tower(w_ref, b_ref, side_ref):
    """ReLU(W @ side + b) -> (E, TB) f32.  W/side are bf16, f32 accumulate."""
    z = jnp.dot(w_ref[...], side_ref[...], preferred_element_type=jnp.float32)
    return jnp.maximum(z + b_ref[...], 0.0)


def _store_scores(out_ref, u_e, pos_e, neg_e):
    """Two lane-dense (1, TB) row stores (avoids the sublane concat)."""
    out_ref[0:1, :] = jnp.sum(u_e * pos_e, axis=0, keepdims=True)
    out_ref[1:2, :] = jnp.sum(u_e * neg_e, axis=0, keepdims=True)


def _fused_gather_kernel(uid_ref, pid_ref, nid_ref, side_ref,
                         uemb_ref, iemb_ref, w_ref, b_ref, out_ref):
    """Small-vocab path: tables VMEM-resident, gather = one-hot MXU matmul.

    uid/pid/nid : (1, TB) int32   streamed indices
    side        : (S, TB) bf16    streamed side features (transposed)
    uemb        : (E, NU) bf16    user table, transposed, grid-resident
    iemb        : (E, NI) bf16    item table, transposed, grid-resident
    w           : (E, S)  bf16    side-MLP weight, grid-resident
    b           : (E, 1)  f32     side-MLP bias, grid-resident
    out         : (2, TB) f32     row 0 = pos score, row 1 = neg score
    """
    tb = uid_ref.shape[1]

    def gather(table, idx):                       # (E, N) x (1, TB) -> (E, TB)
        n = table.shape[1]
        rows = jax.lax.broadcasted_iota(jnp.int32, (n, tb), 0)
        onehot = jnp.where(rows == idx, 1.0, 0.0).astype(jnp.bfloat16)
        return jnp.dot(table, onehot, preferred_element_type=jnp.float32)

    u_id = gather(uemb_ref[...], uid_ref[...])
    pos_e = gather(iemb_ref[...], pid_ref[...])
    neg_e = gather(iemb_ref[...], nid_ref[...])
    u_e = u_id + _side_tower(w_ref, b_ref, side_ref)
    _store_scores(out_ref, u_e, pos_e, neg_e)


def _streamed_kernel(uid_ref, pos_ref, neg_ref, side_ref, w_ref, b_ref,
                     out_ref):
    """Large-vocab path: pre-gathered bf16 embeddings streamed per tile.

    uid/pos/neg : (E, TB) bf16   pre-gathered, transposed embeddings
    side        : (S, TB) bf16
    w, b, out   : as in _fused_gather_kernel
    """
    u_e = uid_ref[...].astype(jnp.float32) + _side_tower(w_ref, b_ref, side_ref)
    _store_scores(out_ref, u_e,
                  pos_ref[...].astype(jnp.float32),
                  neg_ref[...].astype(jnp.float32))


# --------------------------------------------------------------------------
# Wrapper
# --------------------------------------------------------------------------
_FUSED_VOCAB_LIMIT = 128     # one-hot gather only wins for tiny tables
_MAX_TILE_B = 16384          # keeps bf16 double-buffer inside v5e's 16 MiB


def two_tower_side_forward(params, u, pos, neg, side, *,
                           tile_b=8192, force_streamed=False):
    """Forward pass matching TwoTowerSide.forward.

    u, pos, neg : int32 (B, 1) index tensors
    side        : float32 (B, side_dim)
    returns     : (pos_score, neg_score), each float32 (B,)
    """
    user_emb = params["user_emb"]            # (n_users, E)
    item_emb = params["item_emb"]            # (n_items, E)
    w = params["w"]                          # (E, S)  -- torch nn.Linear layout
    b = params["b"]                          # (E,)

    n_users, E = user_emb.shape
    n_items = item_emb.shape[0]
    B = u.shape[0]
    S = side.shape[1]

    # --- batch tiling: batch lives on the lane axis => multiples of 128 ----
    tile_b = max(128, (min(int(tile_b), _MAX_TILE_B) // 128) * 128)
    Bp = pl.cdiv(B, 128) * 128               # pad batch to a lane multiple
    tb = min(tile_b, Bp)
    if tb == Bp and Bp % 256 == 0:
        tb = Bp // 2                         # >=2 tiles keeps both v7x cores fed
    Bp = pl.cdiv(Bp, tb) * tb
    num_tiles = Bp // tb
    pad = Bp - B

    # Padded entries: index 0 (a valid row) + zero side features; their
    # scores are garbage and get sliced off at the end.
    uidx = jnp.pad(u[:, 0], (0, pad)).astype(jnp.int32)
    pidx = jnp.pad(pos[:, 0], (0, pad)).astype(jnp.int32)
    nidx = jnp.pad(neg[:, 0], (0, pad)).astype(jnp.int32)
    side_t = jnp.pad(side, ((0, pad), (0, 0))).astype(jnp.bfloat16).T  # (S, Bp)

    w_bf = w.astype(jnp.bfloat16)            # (E, S), grid-resident
    b_col = b.astype(jnp.float32).reshape(E, 1)

    def tiled(rows):
        return pl.BlockSpec((rows, tb), lambda i: (0, i))

    def resident(shape):
        return pl.BlockSpec(shape, lambda i: (0, 0))

    out_shape = jax.ShapeDtypeStruct((2, Bp), jnp.float32)
    out_spec = pl.BlockSpec((2, tb), lambda i: (0, i))
    cparams = pltpu.CompilerParams(dimension_semantics=("parallel",))

    use_fused = (not force_streamed
                 and max(n_users, n_items) <= _FUSED_VOCAB_LIMIT)

    if use_fused:
        # Tables stay in VMEM for the whole grid; gather happens in-kernel,
        # so only indices + side features stream from HBM.
        nu = ((n_users + 7) // 8) * 8
        ni = ((n_items + 7) // 8) * 8
        uemb_t = jnp.pad(user_emb.astype(jnp.bfloat16).T,
                         ((0, 0), (0, nu - n_users)))          # (E, nu)
        iemb_t = jnp.pad(item_emb.astype(jnp.bfloat16).T,
                         ((0, 0), (0, ni - n_items)))          # (E, ni)
        out = pl.pallas_call(
            _fused_gather_kernel,
            out_shape=out_shape,
            grid=(num_tiles,),
            in_specs=[
                tiled(1), tiled(1), tiled(1),   # uid / pos / neg indices
                tiled(S),                       # side features (bf16)
                resident((E, nu)),              # user table (VMEM-resident)
                resident((E, ni)),              # item table (VMEM-resident)
                resident((E, S)),               # W
                resident((E, 1)),               # b
            ],
            out_specs=out_spec,
            compiler_params=cparams,
        )(uidx.reshape(1, Bp), pidx.reshape(1, Bp), nidx.reshape(1, Bp),
          side_t, uemb_t, iemb_t, w_bf, b_col)
    else:
        # Large vocab: gather in XLA glue, stream the rows as bf16 (half the
        # bytes of the f32 version).  See TODO at the top for the DMA-gather
        # variant that would remove this intermediate as well.
        ue_bf = user_emb.astype(jnp.bfloat16)
        ie_bf = item_emb.astype(jnp.bfloat16)
        u_id_t = ue_bf[uidx].T               # (E, Bp)
        pos_t = ie_bf[pidx].T                # (E, Bp)
        neg_t = ie_bf[nidx].T                # (E, Bp)
        out = pl.pallas_call(
            _streamed_kernel,
            out_shape=out_shape,
            grid=(num_tiles,),
            in_specs=[tiled(E), tiled(E), tiled(E), tiled(S),
                      resident((E, S)), resident((E, 1))],
            out_specs=out_spec,
            compiler_params=cparams,
        )(u_id_t, pos_t, neg_t, side_t, w_bf, b_col)

    return out[0, :B], out[1, :B]


def init_params(key, n_users, n_items, side_dim, emb_dim=32):
    k1, k2, k3, k4 = jax.random.split(key, 4)
    # Shapes match the nn.Module's __init__ (nn.Linear weight = (out, in)).
    return {
        "user_emb": jax.random.normal(k1, (n_users, emb_dim), jnp.float32),
        "item_emb": jax.random.normal(k2, (n_items, emb_dim), jnp.float32),
        "w": jax.random.normal(k3, (emb_dim, side_dim), jnp.float32)
             * (1.0 / jnp.sqrt(side_dim)),
        "b": jax.random.normal(k4, (emb_dim,), jnp.float32) * 0.01,
    }


if __name__ == "__main__":
    n_users, n_items, side_dim, emb_dim = 10, 20, 16, 32
    B = 8

    params = init_params(jax.random.PRNGKey(0), n_users, n_items,
                         side_dim, emb_dim)

    ku, kp, kn, ks = jax.random.split(jax.random.PRNGKey(1), 4)
    u = jax.random.randint(ku, (B, 1), 0, n_users, dtype=jnp.int32)
    pos = jax.random.randint(kp, (B, 1), 0, n_items, dtype=jnp.int32)
    neg = jax.random.randint(kn, (B, 1), 0, n_items, dtype=jnp.int32)
    side = jax.random.normal(ks, (B, side_dim), jnp.float32)

    # Fused path (VMEM-resident tables + in-kernel one-hot gather).
    pos_f, neg_f = two_tower_side_forward(params, u, pos, neg, side)
    # Streamed fallback path (pre-gathered bf16 embeddings).
    pos_s, neg_s = two_tower_side_forward(params, u, pos, neg, side,
                                          force_streamed=True)
    jax.block_until_ready((pos_f, neg_f, pos_s, neg_s))

    # Plain-JAX reference with the same bf16 quantization the kernels stream.
    q = lambda x: x.astype(jnp.bfloat16).astype(jnp.float32)
    u_e_ref = (q(params["user_emb"])[u[:, 0]]
               + jnp.maximum(
                   jnp.dot(q(side), q(params["w"]).T,
                           precision=jax.lax.Precision.HIGHEST)
                   + params["b"], 0.0))
    pos_ref = jnp.sum(u_e_ref * q(params["item_emb"])[pos[:, 0]], axis=1)
    neg_ref = jnp.sum(u_e_ref * q(params["item_emb"])[neg[:, 0]], axis=1)

    assert jnp.allclose(pos_f, pos_ref, atol=1e-3, rtol=1e-3)
    assert jnp.allclose(neg_f, neg_ref, atol=1e-3, rtol=1e-3)
    assert jnp.allclose(pos_s, pos_ref, atol=1e-3, rtol=1e-3)
    assert jnp.allclose(neg_s, neg_ref, atol=1e-3, rtol=1e-3)

    print("KERNEL_OK")
</pallas_src>

<mosaic_0001>
module attributes {stable_mosaic.version = 11 : i64} {
  func.func @_fused_gather_kernel(%arg0: i32, %arg1: memref<1x128xi32, #tpu.memory_space<vmem>>, %arg2: memref<1x128xi32, #tpu.memory_space<vmem>>, %arg3: memref<1x128xi32, #tpu.memory_space<vmem>>, %arg4: memref<16x128xbf16, #tpu.memory_space<vmem>>, %arg5: memref<32x16xbf16, #tpu.memory_space<vmem>>, %arg6: memref<32x24xbf16, #tpu.memory_space<vmem>>, %arg7: memref<32x16xbf16, #tpu.memory_space<vmem>>, %arg8: memref<32x1xf32, #tpu.memory_space<vmem>>, %arg9: memref<2x128xf32, #tpu.memory_space<vmem>>) attributes {dimension_semantics = [#tpu.dimension_semantics<parallel>], iteration_bounds = array<i64: 1>, scalar_prefetch = 0 : i64, scratch_operands = 0 : i64, tpu.core_type = #tpu.core_type<tc>, window_params = [{transform_indices = @transform_0, window_bounds = array<i64: 1, 128>}, {transform_indices = @transform_1, window_bounds = array<i64: 1, 128>}, {transform_indices = @transform_2, window_bounds = array<i64: 1, 128>}, {transform_indices = @transform_3, window_bounds = array<i64: 16, 128>}, {pipeline_mode = #tpu.pipeline_mode<synchronous>, transform_indices = @transform_4, window_bounds = array<i64: 32, 16>}, {pipeline_mode = #tpu.pipeline_mode<synchronous>, transform_indices = @transform_5, window_bounds = array<i64: 32, 24>}, {pipeline_mode = #tpu.pipeline_mode<synchronous>, transform_indices = @transform_6, window_bounds = array<i64: 32, 16>}, {pipeline_mode = #tpu.pipeline_mode<synchronous>, transform_indices = @transform_7, window_bounds = array<i64: 32, 1>}, {transform_indices = @transform_8, window_bounds = array<i64: 2, 128>}]} {
    %c0 = arith.constant 0 : index
    %c0_0 = arith.constant 0 : index
    %0 = vector.load %arg5[%c0, %c0_0] : memref<32x16xbf16, #tpu.memory_space<vmem>>, vector<32x16xbf16>
    %c0_1 = arith.constant 0 : index
    %c0_2 = arith.constant 0 : index
    %1 = vector.load %arg1[%c0_1, %c0_2] : memref<1x128xi32, #tpu.memory_space<vmem>>, vector<1x128xi32>
    %2 = tpu.iota {dimensions = array<i32: 0>} : vector<16x128xi32>
    %3 = vector.broadcast %1 : vector<1x128xi32> to vector<16x128xi32>
    %4 = arith.cmpi eq, %2, %3 : vector<16x128xi32>
    %cst = arith.constant 1.000000e+00 : f32
    %cst_3 = arith.constant 0.000000e+00 : f32
    %5 = vector.broadcast %cst : f32 to vector<16x128xf32>
    %6 = vector.broadcast %cst_3 : f32 to vector<16x128xf32>
    %7 = arith.select %4, %5, %6 : vector<16x128xi1>, vector<16x128xf32>
    %8 = arith.truncf %7 : vector<16x128xf32> to vector<16x128xbf16>
    %cst_4 = arith.constant dense<0.000000e+00> : vector<32x128xf32>
    %9 = tpu.matmul %0, %8, %cst_4 {dimension_numbers = #tpu.dot_dimension_numbers<[1], [0], [0], [1], [0, 0, 1, 1], [], []>} : vector<32x16xbf16>, vector<16x128xbf16>, vector<32x128xf32> -> vector<32x128xf32>
    %c0_5 = arith.constant 0 : index
    %c0_6 = arith.constant 0 : index
    %10 = vector.load %arg6[%c0_5, %c0_6] : memref<32x24xbf16, #tpu.memory_space<vmem>>, vector<32x24xbf16>
    %c0_7 = arith.constant 0 : index
    %c0_8 = arith.constant 0 : index
    %11 = vector.load %arg2[%c0_7, %c0_8] : memref<1x128xi32, #tpu.memory_space<vmem>>, vector<1x128xi32>
    %12 = tpu.iota {dimensions = array<i32: 0>} : vector<24x128xi32>
    %13 = vector.broadcast %11 : vector<1x128xi32> to vector<24x128xi32>
    %14 = arith.cmpi eq, %12, %13 : vector<24x128xi32>
    %cst_9 = arith.constant 1.000000e+00 : f32
    %cst_10 = arith.constant 0.000000e+00 : f32
    %15 = vector.broadcast %cst_9 : f32 to vector<24x128xf32>
    %16 = vector.broadcast %cst_10 : f32 to vector<24x128xf32>
    %17 = arith.select %14, %15, %16 : vector<24x128xi1>, vector<24x128xf32>
    %18 = arith.truncf %17 : vector<24x128xf32> to vector<24x128xbf16>
    %cst_11 = arith.constant dense<0.000000e+00> : vector<32x128xf32>
    %19 = tpu.matmul %10, %18, %cst_11 {dimension_numbers = #tpu.dot_dimension_numbers<[1], [0], [0], [1], [0, 0, 1, 1], [], []>} : vector<32x24xbf16>, vector<24x128xbf16>, vector<32x128xf32> -> vector<32x128xf32>
    %c0_12 = arith.constant 0 : index
    %c0_13 = arith.constant 0 : index
    %20 = vector.load %arg6[%c0_12, %c0_13] : memref<32x24xbf16, #tpu.memory_space<vmem>>, vector<32x24xbf16>
    %c0_14 = arith.constant 0 : index
    %c0_15 = arith.constant 0 : index
    %21 = vector.load %arg3[%c0_14, %c0_15] : memref<1x128xi32, #tpu.memory_space<vmem>>, vector<1x128xi32>
    %22 = tpu.iota {dimensions = array<i32: 0>} : vector<24x128xi32>
    %23 = vector.broadcast %21 : vector<1x128xi32> to vector<24x128xi32>
    %24 = arith.cmpi eq, %22, %23 : vector<24x128xi32>
    %cst_16 = arith.constant 1.000000e+00 : f32
    %cst_17 = arith.constant 0.000000e+00 : f32
    %25 = vector.broadcast %cst_16 : f32 to vector<24x128xf32>
    %26 = vector.broadcast %cst_17 : f32 to vector<24x128xf32>
    %27 = arith.select %24, %25, %26 : vector<24x128xi1>, vector<24x128xf32>
    %28 = arith.truncf %27 : vector<24x128xf32> to vector<24x128xbf16>
    %cst_18 = arith.constant dense<0.000000e+00> : vector<32x128xf32>
    %29 = tpu.matmul %20, %28, %cst_18 {dimension_numbers = #tpu.dot_dimension_numbers<[1], [0], [0], [1], [0, 0, 1, 1], [], []>} : vector<32x24xbf16>, vector<24x128xbf16>, vector<32x128xf32> -> vector<32x128xf32>
    %c0_19 = arith.constant 0 : index
    %c0_20 = arith.constant 0 : index
    %30 = vector.load %arg7[%c0_19, %c0_20] : memref<32x16xbf16, #tpu.memory_space<vmem>>, vector<32x16xbf16>
    %c0_21 = arith.constant 0 : index
    %c0_22 = arith.constant 0 : index
    %31 = vector.load %arg4[%c0_21, %c0_22] : memref<16x128xbf16, #tpu.memory_space<vmem>>, vector<16x128xbf16>
    %cst_23 = arith.constant dense<0.000000e+00> : vector<32x128xf32>
    %32 = tpu.matmul %30, %31, %cst_23 {dimension_numbers = #tpu.dot_dimension_numbers<[1], [0], [0], [1], [0, 0, 1, 1], [], []>} : vector<32x16xbf16>, vector<16x128xbf16>, vector<32x128xf32> -> vector<32x128xf32>
    %c0_24 = arith.constant 0 : index
    %c0_25 = arith.constant 0 : index
    %33 = vector.load %arg8[%c0_24, %c0_25] : memref<32x1xf32, #tpu.memory_space<vmem>>, vector<32x1xf32>
    %34 = vector.broadcast %33 : vector<32x1xf32> to vector<32x128xf32>
    %35 = arith.addf %32, %34 : vector<32x128xf32>
    %cst_26 = arith.constant 0.000000e+00 : f32
    %36 = vector.broadcast %cst_26 : f32 to vector<32x128xf32>
    %37 = arith.maximumf %35, %36 : vector<32x128xf32>
    %38 = arith.addf %9, %37 : vector<32x128xf32>
    %39 = arith.mulf %38, %19 : vector<32x128xf32>
    %cst_27 = arith.constant dense<0.000000e+00> : vector<128xf32>
    %40 = vector.multi_reduction <add>, %39, %cst_27 [0] : vector<32x128xf32> to vector<128xf32>
    %41 = vector.shape_cast %40 : vector<128xf32> to vector<1x128xf32>
    %c0_28 = arith.constant 0 : index
    %c0_29 = arith.constant 0 : index
    %42 = vector.load %arg9[%c0_28, %c0_29] : memref<2x128xf32, #tpu.memory_space<vmem>>, vector<1x128xf32>
    tpu.vector_store %arg9[%c0_28, %c0_29], %41 {strides = array<i32>} : memref<2x128xf32, #tpu.memory_space<vmem>>, vector<1x128xf32>,
    %43 = arith.mulf %38, %29 : vector<32x128xf32>
    %cst_30 = arith.constant dense<0.000000e+00> : vector<128xf32>
    %44 = vector.multi_reduction <add>, %43, %cst_30 [0] : vector<32x128xf32> to vector<128xf32>
    %45 = vector.shape_cast %44 : vector<128xf32> to vector<1x128xf32>
    %c1 = arith.constant 1 : index
    %c0_31 = arith.constant 0 : index
    %46 = vector.load %arg9[%c1, %c0_31] : memref<2x128xf32, #tpu.memory_space<vmem>>, vector<1x128xf32>
    tpu.vector_store %arg9[%c1, %c0_31], %45 {strides = array<i32>} : memref<2x128xf32, #tpu.memory_space<vmem>>, vector<1x128xf32>,
    return
  }
  func.func @transform_0(%arg0: i32) -> (i32, i32) {
    %c0_i32 = arith.constant 0 : i32
    %c0_i32_0 = arith.constant 0 : i32
    return %c0_i32, %arg0 : i32, i32
  }
  func.func @transform_1(%arg0: i32) -> (i32, i32) {
    %c0_i32 = arith.constant 0 : i32
    %c0_i32_0 = arith.constant 0 : i32
    return %c0_i32, %arg0 : i32, i32
  }
  func.func @transform_2(%arg0: i32) -> (i32, i32) {
    %c0_i32 = arith.constant 0 : i32
    %c0_i32_0 = arith.constant 0 : i32
    return %c0_i32, %arg0 : i32, i32
  }
  func.func @transform_3(%arg0: i32) -> (i32, i32) {
    %c0_i32 = arith.constant 0 : i32
    %c0_i32_0 = arith.constant 0 : i32
    return %c0_i32, %arg0 : i32, i32
  }
  func.func @transform_4(%arg0: i32) -> (i32, i32) {
    %c0_i32 = arith.constant 0 : i32
    %c0_i32_0 = arith.constant 0 : i32
    %c0_i32_1 = arith.constant 0 : i32
    return %c0_i32, %c0_i32_0 : i32, i32
  }
  func.func @transform_5(%arg0: i32) -> (i32, i32) {
    %c0_i32 = arith.constant 0 : i32
    %c0_i32_0 = arith.constant 0 : i32
    %c0_i32_1 = arith.constant 0 : i32
    return %c0_i32, %c0_i32_0 : i32, i32
  }
  func.func @transform_6(%arg0: i32) -> (i32, i32) {
    %c0_i32 = arith.constant 0 : i32
    %c0_i32_0 = arith.constant 0 : i32
    %c0_i32_1 = arith.constant 0 : i32
    return %c0_i32, %c0_i32_0 : i32, i32
  }
  func.func @transform_7(%arg0: i32) -> (i32, i32) {
    %c0_i32 = arith.constant 0 : i32
    %c0_i32_0 = arith.constant 0 : i32
    %c0_i32_1 = arith.constant 0 : i32
    return %c0_i32, %c0_i32_0 : i32, i32
  }
  func.func @transform_8(%arg0: i32) -> (i32, i32) {
    %c0_i32 = arith.constant 0 : i32
    %c0_i32_0 = arith.constant 0 : i32
    return %c0_i32, %arg0 : i32, i32
  }
}

</mosaic_0001>

<llo_original>
// kernel: tpu_custom_call.1
$region0: #{tpu_custom_call.1}
  #allocation0 [shape = 'u32[]', space=smem, size = 0x4, offset = 0x4, fixed_abs, tag = 'smem constant byte address 0x4 - core index']
  #allocation1 [shape = 'u32[144,128]{1,0:T(1,128)}', space=vmem, size = 0x12000, scoped, tag = 'internal scratch']
  %s0 = inlined_call_operand.vmem [shape: s32[1,128], index: 0, kind: input, shape index: {}]
  %s1 = inlined_call_operand.vmem [shape: s32[1,128], index: 1, kind: input, shape index: {}]
  %s2 = inlined_call_operand.vmem [shape: s32[1,128], index: 2, kind: input, shape index: {}]
  %s3 = inlined_call_operand.vmem [shape: bf16[16,128], index: 3, kind: input, shape index: {}]
  %s4 = inlined_call_operand.vmem [shape: bf16[32,16], index: 4, kind: input, shape index: {}]
  %s5 = inlined_call_operand.vmem [shape: bf16[32,24], index: 5, kind: input, shape index: {}]
  %s6 = inlined_call_operand.vmem [shape: bf16[32,16], index: 6, kind: input, shape index: {}]
  %s7 = inlined_call_operand.vmem [shape: f32[32,1], index: 7, kind: input, shape index: {}]
  %s8 = inlined_call_operand.hbm [shape: f32[2,128], index: 8, kind: output, shape index: {}]
  %s9 = sld [smem:[#allocation0]]
  $region42: #{tpu_custom_call.1} parent=0
    _
  %s11 = ssub.s32 1, %s9
  %s12 = scalar_select 0, %s11, %s9
  $region1: #{tpu_custom_call.1} parent=0
    #allocation2 [shape = 'u8[1024]{0}', space=vmem, size = 0x400, scoped, tag = 'output window, operand 0, single buffered']
    #allocation3 [shape = 's32[1]{0}', space=sflag, size = 0x4, scoped, tag = 'scoped memory for tpu_custom_call.1']
    %13 = vsyncpa [#allocation3], 0
    // Predicated region
    $region2: #{tpu_custom_call.1} parent=1 // pred_check
      _
    $region3: #{tpu_custom_call.1} parent=1 // pred_check_branch
      %15 = sbr.rel (0) target = $region5
    $region4: #{tpu_custom_call.1} parent=1 // pred_region
      _
    $region5: #{tpu_custom_call.1} parent=1 // pred_fallthru
      _
    // Predicated region
    $region6: #{tpu_custom_call.1} parent=1 // pred_check
      _
    $region7: #{tpu_custom_call.1} parent=1 // pred_check_branch
      %17 = sbr.rel (0) target = $region9
    $region8: #{tpu_custom_call.1} parent=1 // pred_region
      _
    $region9: #{tpu_custom_call.1} parent=1 // pred_fallthru
      _
    // Predicated region
    $region10: #{tpu_custom_call.1} parent=1 // pred_check
      _
    $region11: #{tpu_custom_call.1} parent=1 // pred_check_branch
      %19 = sbr.rel (0) target = $region13
    $region12: #{tpu_custom_call.1} parent=1 // pred_region
      _
    $region13: #{tpu_custom_call.1} parent=1 // pred_fallthru
      _
    // Predicated region
    $region14: #{tpu_custom_call.1} parent=1 // pred_check
      _
    $region15: #{tpu_custom_call.1} parent=1 // pred_check_branch
      %21 = sbr.rel (0) target = $region17
    $region16: #{tpu_custom_call.1} parent=1 // pred_region
      _
    $region17: #{tpu_custom_call.1} parent=1 // pred_fallthru
      _
    // Predicated region
    $region18: #{tpu_custom_call.1} parent=1 // pred_check
      _
    $region19: #{tpu_custom_call.1} parent=1 // pred_check_branch
      %23 = sbr.rel (0) target = $region21
    $region20: #{tpu_custom_call.1} parent=1 // pred_region
      _
    $region21: #{tpu_custom_call.1} parent=1 // pred_fallthru
      _
    // Predicated region
    $region22: #{tpu_custom_call.1} parent=1 // pred_check
      _
    $region23: #{tpu_custom_call.1} parent=1 // pred_check_branch
      %25 = sbr.rel (0) target = $region25
    $region24: #{tpu_custom_call.1} parent=1 // pred_region
      _
    $region25: #{tpu_custom_call.1} parent=1 // pred_fallthru
      _
    // Predicated region
    $region26: #{tpu_custom_call.1} parent=1 // pred_check
      _
    $region27: #{tpu_custom_call.1} parent=1 // pred_check_branch
      %27 = sbr.rel (0) target = $region29
    $region28: #{tpu_custom_call.1} parent=1 // pred_region
      _
    $region29: #{tpu_custom_call.1} parent=1 // pred_fallthru
      _
    // Predicated region
    $region30: #{tpu_custom_call.1} parent=1 // pred_check
      _
    $region31: #{tpu_custom_call.1} parent=1 // pred_check_branch
      %29 = sbr.rel (0) target = $region33
    $region32: #{tpu_custom_call.1} parent=1 // pred_region
      _
    $region33: #{tpu_custom_call.1} parent=1 // pred_fallthru
      _
    %v31 = vld [vmem:[%s4] sm:$0xf]
    %v32 = vld [vmem:[%s4 + $0x4] sm:$0xf]
    %v33 = vld [vmem:[%s4 + $0x8] sm:$0xf]
    %v34 = vld [vmem:[%s4 + $0xc] sm:$0xf]
    %v35 = vld [vmem:[%s0] sm:$0x1]
    %v36 = vlaneseq
    %v37 = vshrl.u32 %v36, 7
    %v38 = vadd.s32 %v37, 8
    %v39 = vlaneseq
    %v40 = vshrl.u32 %v39, 7
    %v41 = vsub.s32 0, %v40
    %v42 = vrot.slane %v35, %v41
    %vm43 = vcmp.eq.s32.totalorder %v37, %v42
    %vm44 = vcmp.eq.s32.totalorder %v38, %v42
    %v45 = vsel %vm43, 1.0, 0.0
    %v46 = vsel %vm44, 1.0, 0.0
    %v47 = vpack.c.bf16 %v46, %v45
    %v48 = vld [vmem:[%s5] sm:$0xf]
    %v49 = vld [vmem:[%s5 + $0x4] sm:$0xf]
    %v50 = vld [vmem:[%s5 + $0x8] sm:$0xf]
    %v51 = vld [vmem:[%s5 + $0xc] sm:$0xf]
    %v52 = vld [vmem:[%s1] sm:$0x1]
    %v53 = vadd.s32 %v37, 16
    %v54 = vlaneseq
    %v55 = vshrl.u32 %v54, 7
    %v56 = vsub.s32 0, %v55
    %v57 = vrot.slane %v52, %v56
    %vm58 = vcmp.eq.s32.totalorder %v37, %v57
    %vm59 = vcmp.eq.s32.totalorder %v38, %v57
    %vm60 = vcmp.eq.s32.totalorder %v53, %v57
    %v61 = vsel %vm58, 1.0, 0.0
    %v62 = vsel %vm59, 1.0, 0.0
    %v63 = vsel %vm60, 1.0, 0.0
    %v64 = vpack.c.bf16 %v62, %v61
    %v65 = vpack.c.bf16 %v63, %v63
    %v70 = vunpack.c.l.b16 %v48
    %v71 = vunpack.c.l.b16 %v49
    %v72 = vunpack.c.l.b16 %v50
    %v73 = vunpack.c.l.b16 %v51
    %v74 = vpack.c.b16 %v71, %v70
    %v75 = vpack.c.b16 %v73, %v72
    %vm76 = vcmask 195584
    %v78 = vsel %vm76, %v74, 0
    %v81 = vsel %vm76, %v75, 0
    %vm83 = vcmask 1043456
    %v85 = vsel %vm83, %v65, 0
    %87 = vmatprep.subr.bf16.mxu0 0
    %88 = vmatpush1.bf16.msra.mxu0 0
    %89 = vmatprep.subr.bf16.mxu0 0
    %90 = vmatpush1.bf16.msra.mxu0 0
    %91 = vmatprep.subr.bf16.mxu0 0
    %92 = vmatpush1.bf16.msra.mxu0 0
    %93 = vmatprep.subr.bf16.mxu0 0
    %94 = vmatpush1.bf16.msra.mxu0 0
    %95 = vmatprep.subr.bf16.mxu0 0
    %96 = vmatpush1.bf16.msra.mxu0 0
    %97 = vmatprep.subr.bf16.mxu0 0
    %98 = vmatpush1.bf16.msra.mxu0 0
    %99 = vmatprep.subr.bf16.mxu0 0
    %100 = vmatpush1.bf16.msra.mxu0 %v85
    %101 = vmatprep.subr.bf16.mxu0 0
    %102 = vmatpush1.bf16.msra.mxu0 %v64
    %103 = vmatprep.subr.bf16.mxu0 0
    %104 = vmatpush2.bf16.msra.mxu0 0
    %105 = vmatprep.subr.bf16.mxu0 0
    %106 = vmatpush2.bf16.msra.mxu0 0
    %107 = vmatprep.subr.bf16.mxu0 0
    %108 = vmatpush2.bf16.msra.mxu0 0
    %109 = vmatprep.subr.bf16.mxu0 0
    %110 = vmatpush2.bf16.msra.mxu0 0
    %111 = vmatprep.subr.bf16.mxu0 0
    %112 = vmatpush2.bf16.msra.mxu0 0
    %113 = vmatprep.subr.bf16.mxu0 0
    %114 = vmatpush2.bf16.msra.mxu0 0
    %115 = vmatprep.subr.bf16.mxu0 0
    %116 = vmatpush2.bf16.msra.mxu0 0
    %117 = vmatprep.subr.bf16.mxu0 0
    %118 = vmatpush2.bf16.msra.mxu0 0
    %119 = vmatprep.mubr.bf16.mxu0 0
    %120 = vmatmul.mubr.bf16.gmra.mxu0 %v78
    %v121 = vpop.f32.mrf.mxu0
    %v122 = vadd.f32 0.0, %v121
    %v123 = vpop.f32.mrf.mxu0
    %v124 = vpop.f32.mrf.mxu0
    %v125 = vadd.f32 0.0, %v124
    %v126 = vpop.f32.mrf.mxu0
    %127 = vmatprep.mubr.bf16.mxu0 0
    %128 = vmatmul.mubr.bf16.gmra.mxu0 %v81
    %v129 = vpop.f32.mrf.mxu0
    %v130 = vadd.f32 0.0, %v129
    %v131 = vpop.f32.mrf.mxu0
    %v132 = vpop.f32.mrf.mxu0
    %v133 = vadd.f32 0.0, %v132
    %v134 = vpop.f32.mrf.mxu0
    %135 = vdwg.mxu0
    %v136 = vld [vmem:[%s2] sm:$0x1]
    %v137 = vlaneseq
    %v138 = vshrl.u32 %v137, 7
    %v139 = vsub.s32 0, %v138
    %v140 = vrot.slane %v136, %v139
    %vm141 = vcmp.eq.s32.totalorder %v37, %v140
    %vm142 = vcmp.eq.s32.totalorder %v38, %v140
    %vm143 = vcmp.eq.s32.totalorder %v53, %v140
    %v144 = vsel %vm141, 1.0, 0.0
    %v145 = vsel %vm142, 1.0, 0.0
    %v146 = vsel %vm143, 1.0, 0.0
    %v147 = vpack.c.bf16 %v145, %v144
    %v148 = vpack.c.bf16 %v146, %v146
    %v150 = vsel %vm83, %v148, 0
    %152 = vmatprep.subr.bf16.mxu0 0
    %153 = vmatpush1.bf16.msra.mxu0 0
    %154 = vmatprep.subr.bf16.mxu0 0
    %155 = vmatpush1.bf16.msra.mxu0 0
    %156 = vmatprep.subr.bf16.mxu0 0
    %157 = vmatpush1.bf16.msra.mxu0 0
    %158 = vmatprep.subr.bf16.mxu0 0
    %159 = vmatpush1.bf16.msra.mxu0 0
    %160 = vmatprep.subr.bf16.mxu0 0
    %161 = vmatpush1.bf16.msra.mxu0 0
    %162 = vmatprep.subr.bf16.mxu0 0
    %163 = vmatpush1.bf16.msra.mxu0 0
    %164 = vmatprep.subr.bf16.mxu0 0
    %165 = vmatpush1.bf16.msra.mxu0 %v150
    %166 = vmatprep.subr.bf16.mxu0 0
    %167 = vmatpush1.bf16.msra.mxu0 %v147
    %168 = vmatprep.subr.bf16.mxu0 0
    %169 = vmatpush2.bf16.msra.mxu0 0
    %170 = vmatprep.subr.bf16.mxu0 0
    %171 = vmatpush2.bf16.msra.mxu0 0
    %172 = vmatprep.subr.bf16.mxu0 0
    %173 = vmatpush2.bf16.msra.mxu0 0
    %174 = vmatprep.subr.bf16.mxu0 0
    %175 = vmatpush2.bf16.msra.mxu0 0
    %176 = vmatprep.subr.bf16.mxu0 0
    %177 = vmatpush2.bf16.msra.mxu0 0
    %178 = vmatprep.subr.bf16.mxu0 0
    %179 = vmatpush2.bf16.msra.mxu0 0
    %180 = vmatprep.subr.bf16.mxu0 0
    %181 = vmatpush2.bf16.msra.mxu0 0
    %182 = vmatprep.subr.bf16.mxu0 0
    %183 = vmatpush2.bf16.msra.mxu0 0
    %184 = vmatprep.mubr.bf16.mxu0 0
    %185 = vmatmul.mubr.bf16.gmra.mxu0 %v78
    %v186 = vpop.f32.mrf.mxu0
    %v187 = vadd.f32 0.0, %v186
    %v188 = vpop.f32.mrf.mxu0
    %v189 = vpop.f32.mrf.mxu0
    %v190 = vadd.f32 0.0, %v189
    %v191 = vpop.f32.mrf.mxu0
    %192 = vmatprep.mubr.bf16.mxu0 0
    %193 = vmatmul.mubr.bf16.gmra.mxu0 %v81
    %v194 = vpop.f32.mrf.mxu0
    %v195 = vadd.f32 0.0, %v194
    %v196 = vpop.f32.mrf.mxu0
    %v197 = vpop.f32.mrf.mxu0
    %v198 = vadd.f32 0.0, %v197
    %v199 = vpop.f32.mrf.mxu0
    %200 = vdwg.mxu0
    %v201 = vld [vmem:[%s6] sm:$0xf]
    %v202 = vld [vmem:[%s6 + $0x4] sm:$0xf]
    %v203 = vld [vmem:[%s6 + $0x8] sm:$0xf]
    %v204 = vld [vmem:[%s6 + $0xc] sm:$0xf]
    %v205 = vld [vmem:[%s3] sm:$0xf]
    %v206 = vld [vmem:[%s3 + $0x4] sm:$0xf]
    %v207 = vld [vmem:[%s7] sm:$0xff]
    %v208 = vld [vmem:[%s7 + $0x8] sm:$0xff]
    %v209 = vld [vmem:[%s7 + $0x10] sm:$0xff]
    %v210 = vld [vmem:[%s7 + $0x18] sm:$0xff]
    %212 = vset.pattern.permute.xlu0 0
    %213 = vperm.xlu0 %212, %v207
    %v214 = vpop.permute.xlu0 %213
    %217 = vset.pattern.permute.xlu0 0
    %218 = vperm.xlu0 %217, %v208
    %v219 = vpop.permute.xlu0 %218
    %222 = vset.pattern.permute.xlu0 0
    %223 = vperm.xlu0 %222, %v209
    %v224 = vpop.permute.xlu0 %223
    %227 = vset.pattern.permute.xlu0 0
    %228 = vperm.xlu0 %227, %v210
    %v229 = vpop.permute.xlu0 %228
    %v235 = vunpack.c.l.b16 %v201
    %v236 = vunpack.c.l.b16 %v202
    %v237 = vunpack.c.l.b16 %v203
    %v238 = vunpack.c.l.b16 %v204
    %v239 = vpack.c.b16 %v236, %v235
    %v240 = vpack.c.b16 %v238, %v237
    %v243 = vunpack.c.l.b16 %v205
    %v244 = vunpack.c.l.b16 %v206
    %v245 = vpack.c.b16 %v244, %v243
    %vm247 = vcmask 130048
    %v249 = vsel %vm247, %v239, 0
    %v252 = vsel %vm247, %v240, 0
    %254 = vmatprep.subr.bf16.mxu0 0
    %255 = vmatpush1.bf16.msra.mxu0 0
    %256 = vmatprep.subr.bf16.mxu0 0
    %257 = vmatpush1.bf16.msra.mxu0 0
    %258 = vmatprep.subr.bf16.mxu0 0
    %259 = vmatpush1.bf16.msra.mxu0 0
    %260 = vmatprep.subr.bf16.mxu0 0
    %261 = vmatpush1.bf16.msra.mxu0 0
    %262 = vmatprep.subr.bf16.mxu0 0
    %263 = vmatpush1.bf16.msra.mxu0 0
    %264 = vmatprep.subr.bf16.mxu0 0
    %265 = vmatpush1.bf16.msra.mxu0 0
    %266 = vmatprep.subr.bf16.mxu0 0
    %267 = vmatpush1.bf16.msra.mxu0 0
    %268 = vmatprep.subr.bf16.mxu0 0
    %269 = vmatpush1.bf16.msra.mxu0 %v245
    %270 = vmatprep.subr.bf16.mxu0 0
    %271 = vmatpush2.bf16.msra.mxu0 0
    %272 = vmatprep.subr.bf16.mxu0 0
    %273 = vmatpush2.bf16.msra.mxu0 0
    %274 = vmatprep.subr.bf16.mxu0 0
    %275 = vmatpush2.bf16.msra.mxu0 0
    %276 = vmatprep.subr.bf16.mxu0 0
    %277 = vmatpush2.bf16.msra.mxu0 0
    %278 = vmatprep.subr.bf16.mxu0 0
    %279 = vmatpush2.bf16.msra.mxu0 0
    %280 = vmatprep.subr.bf16.mxu0 0
    %281 = vmatpush2.bf16.msra.mxu0 0
    %282 = vmatprep.subr.bf16.mxu0 0
    %283 = vmatpush2.bf16.msra.mxu0 0
    %284 = vmatprep.subr.bf16.mxu0 0
    %285 = vmatpush2.bf16.msra.mxu0 0
    %286 = vmatprep.mubr.bf16.mxu0 0
    %287 = vmatmul.mubr.bf16.gmra.mxu0 %v249
    %v288 = vpop.f32.mrf.mxu0
    %v289 = vadd.f32 %v214, %v288
    %v290 = vpop.f32.mrf.mxu0
    %v291 = vpop.f32.mrf.mxu0
    %v292 = vadd.f32 %v219, %v291
    %v293 = vpop.f32.mrf.mxu0
    %294 = vmatprep.mubr.bf16.mxu0 0
    %295 = vmatmul.mubr.bf16.gmra.mxu0 %v252
    %v296 = vpop.f32.mrf.mxu0
    %v297 = vadd.f32 %v224, %v296
    %v298 = vpop.f32.mrf.mxu0
    %v299 = vpop.f32.mrf.mxu0
    %v300 = vadd.f32 %v229, %v299
    %v301 = vpop.f32.mrf.mxu0
    %302 = vdwg.mxu0
    %v303 = vmax.f32 %v289, 0.0
    %v304 = vmax.f32 %v292, 0.0
    %v305 = vmax.f32 %v297, 0.0
    %v306 = vmax.f32 %v300, 0.0
    %v311 = vunpack.c.l.b16 %v31
    %v312 = vunpack.c.l.b16 %v32
    %v313 = vunpack.c.l.b16 %v33
    %v314 = vunpack.c.l.b16 %v34
    %v315 = vpack.c.b16 %v312, %v311
    %v316 = vpack.c.b16 %v314, %v313
    %v318 = vsel %vm247, %v315, 0
    %v321 = vsel %vm247, %v316, 0
    %323 = vmatprep.subr.bf16.mxu0 0
    %324 = vmatpush1.bf16.msra.mxu0 0
    %325 = vmatprep.subr.bf16.mxu0 0
    %326 = vmatpush1.bf16.msra.mxu0 0
    %327 = vmatprep.subr.bf16.mxu0 0
    %328 = vmatpush1.bf16.msra.mxu0 0
    %329 = vmatprep.subr.bf16.mxu0 0
    %330 = vmatpush1.bf16.msra.mxu0 0
    %331 = vmatprep.subr.bf16.mxu0 0
    %332 = vmatpush1.bf16.msra.mxu0 0
    %333 = vmatprep.subr.bf16.mxu0 0
    %334 = vmatpush1.bf16.msra.mxu0 0
    %335 = vmatprep.subr.bf16.mxu0 0
    %336 = vmatpush1.bf16.msra.mxu0 0
    %337 = vmatprep.subr.bf16.mxu0 0
    %338 = vmatpush1.bf16.msra.mxu0 %v47
    %339 = vmatprep.subr.bf16.mxu0 0
    %340 = vmatpush2.bf16.msra.mxu0 0
    %341 = vmatprep.subr.bf16.mxu0 0
    %342 = vmatpush2.bf16.msra.mxu0 0
    %343 = vmatprep.subr.bf16.mxu0 0
    %344 = vmatpush2.bf16.msra.mxu0 0
    %345 = vmatprep.subr.bf16.mxu0 0
    %346 = vmatpush2.bf16.msra.mxu0 0
    %347 = vmatprep.subr.bf16.mxu0 0
    %348 = vmatpush2.bf16.msra.mxu0 0
    %349 = vmatprep.subr.bf16.mxu0 0
    %350 = vmatpush2.bf16.msra.mxu0 0
    %351 = vmatprep.subr.bf16.mxu0 0
    %352 = vmatpush2.bf16.msra.mxu0 0
    %353 = vmatprep.subr.bf16.mxu0 0
    %354 = vmatpush2.bf16.msra.mxu0 0
    %355 = vmatprep.mubr.bf16.mxu0 0
    %356 = vmatmul.mubr.bf16.gmra.mxu0 %v318
    %v357 = vpop.f32.mrf.mxu0
    %v358 = vadd.f32 %v303, %v357
    %v359 = vpop.f32.mrf.mxu0
    %v360 = vpop.f32.mrf.mxu0
    %v361 = vadd.f32 %v304, %v360
    %v362 = vpop.f32.mrf.mxu0
    %363 = vmatprep.mubr.bf16.mxu0 0
    %364 = vmatmul.mubr.bf16.gmra.mxu0 %v321
    %v365 = vpop.f32.mrf.mxu0
    %v366 = vadd.f32 %v305, %v365
    %v367 = vpop.f32.mrf.mxu0
    %v368 = vpop.f32.mrf.mxu0
    %v369 = vadd.f32 %v306, %v368
    %v370 = vpop.f32.mrf.mxu0
    %371 = vdwg.mxu0
    %v372 = vmul.f32 %v358, %v122
    %v373 = vmul.f32 %v361, %v125
    %v374 = vmul.f32 %v366, %v130
    %v375 = vmul.f32 %v369, %v133
    %v376 = vadd.f32 %v372, %v373
    %v377 = vadd.f32 %v376, %v374
    %v378 = vadd.f32 %v377, %v375
    %v379 = vrot.slane %v378, 4
    %v380 = vadd.f32 %v378, %v379
    %v381 = vrot.slane %v380, 2
    %v382 = vadd.f32 %v380, %v381
    %v383 = vrot.slane %v382, 1
    %v384 = vadd.f32 %v382, %v383
    %385 = vst [vmem:[#allocation2] sm:$0x1] %v384
    %v386 = vmul.f32 %v358, %v187
    %v387 = vmul.f32 %v361, %v190
    %v388 = vmul.f32 %v366, %v195
    %v389 = vmul.f32 %v369, %v198
    %v390 = vadd.f32 %v386, %v387
    %v391 = vadd.f32 %v390, %v388
    %v392 = vadd.f32 %v391, %v389
    %v393 = vrot.slane %v392, 4
    %v394 = vadd.f32 %v392, %v393
    %v395 = vrot.slane %v394, 2
    %v396 = vadd.f32 %v394, %v395
    %v397 = vrot.slane %v396, 1
    %v398 = vadd.f32 %v396, %v397
    %399 = vst [vmem:[#allocation2 + $0x1] sm:$0x1] %v398
    // Predicated region
    $region34: #{tpu_custom_call.1} parent=1 // pred_check
      _
    $region35: #{tpu_custom_call.1} parent=1 // pred_check_branch
      %401 = sbr.rel (0) target = $region37
    $region36: #{tpu_custom_call.1} parent=1 // pred_region
      %s403 = ssub.s32 32, 32
      %404 = vsyncadd [#allocation3], %s403
      %s406 = sshll.u32 [#allocation2], 4
      %s407 = int_to_ptr.vmem [resolvable:$true] %s406
      %409 = dma.vmem_to_hbm [thread:$0]  %s407, 32, %s8, [#allocation3]
    $region37: #{tpu_custom_call.1} parent=1 // pred_fallthru
      _
    // Predicated region
    $region38: #{tpu_custom_call.1} parent=1 // pred_check
      _
    $region39: #{tpu_custom_call.1} parent=1 // pred_check_branch
      %411 = sbr.rel (0) target = $region41
    $region40: #{tpu_custom_call.1} parent=1 // pred_region
      %412 = dma.done [#allocation3], 32
    $region41: #{tpu_custom_call.1} parent=1 // pred_fallthru
      _
    %413 = vsyncpa [#allocation3], 1

</llo_original>
